<compile_context>
chip_gen: v6e
topology: v6e:2x2x1
jax: 0.10.0
libtpu: 0.0.40
codegen_flags: <defaults>
</compile_context>

<pallas_src>
import numpy as np
import jax
import jax.numpy as jnp
from jax.experimental import pallas as pl
from jax.experimental.pallas import tpu as pltpu

STATE_SIZE = 24     # BipedalWalker-v3 observation dim
ACTION_SIZE = 4     # BipedalWalker-v3 action dim
H1 = 400            # fc1 width (already a 16-multiple: dense bf16 storage)
H2 = 300            # fc2 logical width
H2_PAD = 304        # fc2 padded width (16-multiple for bf16 sublane packing)
OUT_PAD = 128       # lane-dense output width (sliced back to ACTION_SIZE)
BCAT_W = max(H1, H2_PAD, OUT_PAD)   # packed-bias row width (= 400)


def _round_up(n, m):
    return ((n + m - 1) // m) * m


def _cdiv(a, b):
    return (a + b - 1) // b


def actor_kernel(x_ref, w1_ref, w2_ref, w3_ref, b_ref, out_ref):
    bf = jnp.bfloat16
    # Packed biases: one row per layer, lane-0-aligned static slices.
    b1 = b_ref[0:1, :H1]
    b2 = b_ref[1:2, :H2_PAD]
    b3 = b_ref[2:3, :OUT_PAD]
    # fc1 + ReLU  (bf16 MXU inputs, f32 accumulate, f32 epilogue, bf16 temp)
    h1 = jnp.dot(x_ref[...].astype(bf), w1_ref[...],
                 preferred_element_type=jnp.float32)
    h1 = jnp.maximum(h1 + b1, 0.0).astype(bf)
    # fc2 + ReLU  (padded cols have zero weight & bias -> stay exactly 0)
    h2 = jnp.dot(h1, w2_ref[...], preferred_element_type=jnp.float32)
    h2 = jnp.maximum(h2 + b2, 0.0).astype(bf)
    # fc3 + tanh  (lane-dense 128-wide output; padded cols are tanh(0)=0)
    h3 = jnp.dot(h2, w3_ref[...], preferred_element_type=jnp.float32)
    out_ref[...] = jnp.tanh(h3 + b3).astype(out_ref.dtype)


def _choose_tiling(B, block_b):
    """Pick (bm, Bp): batch tile and padded batch."""
    single_tile_cap = min(256, block_b)
    if B <= single_tile_cap:
        # Rollout / small-batch path: one grid step, minimal fixed overhead.
        bm = _round_up(B, 8)
    else:
        # Large batch: an even number (>= 2) of tiles so the "parallel" axis
        # can shard across v7x's two TensorCores; bm adapts to B to cap
        # batch-padding waste at one sublane group.
        n_tiles = 2 * _cdiv(B, 2 * block_b)
        bm = _round_up(_cdiv(B, n_tiles), 8)
    Bp = _round_up(B, bm)
    return bm, Bp


def policy_actor_forward(x, packed_params, *, block_b=512):
    """x: (B, STATE_SIZE) f32.  Returns (B, ACTION_SIZE) f32 in [-1, 1]."""
    w1, w2, w3, bcat = packed_params
    B = x.shape[0]

    bm, Bp = _choose_tiling(B, block_b)
    if Bp != B:
        x = jnp.pad(x, ((0, Bp - B), (0, 0)))
    grid = (Bp // bm,)

    def resident(shape):
        # Same block every grid step: weights/biases stay VMEM-resident.
        return pl.BlockSpec(shape, lambda i: (0,) * len(shape))

    flops = 2 * Bp * (STATE_SIZE * H1 + H1 * H2_PAD + H2_PAD * OUT_PAD)
    bytes_accessed = (
        x.size * 4
        + (w1.size + w2.size + w3.size) * 2          # bf16 weights
        + bcat.size * 4                               # packed f32 biases
        + Bp * OUT_PAD * 4                            # f32 output
    )

    out = pl.pallas_call(
        actor_kernel,
        out_shape=jax.ShapeDtypeStruct((Bp, OUT_PAD), jnp.float32),
        grid=grid,
        in_specs=[
            pl.BlockSpec((bm, STATE_SIZE), lambda i: (i, 0)),
            resident(w1.shape), resident(w2.shape), resident(w3.shape),
            resident(bcat.shape),
        ],
        out_specs=pl.BlockSpec((bm, OUT_PAD), lambda i: (i, 0)),
        compiler_params=pltpu.CompilerParams(
            dimension_semantics=("parallel",),
            vmem_limit_bytes=32 << 20,
        ),
        cost_estimate=pl.CostEstimate(
            flops=flops,
            transcendentals=Bp * OUT_PAD,
            bytes_accessed=bytes_accessed,
        ),
    )(x, w1, w2, w3, bcat)

    return out[:B, :ACTION_SIZE]


def init_params(key):
    """Deterministic init mirroring the PyTorch module's init scheme.

    PyTorch nn.Linear default: U(-1/sqrt(fan_in), 1/sqrt(fan_in)) for weight & bias.
    init_params() then overrides fc1.weight with U(+-1/sqrt(300)) (its buggy second
    call wins) and fc3.weight with U(-0.003, 0.003). fc2 keeps default init.
    Weights stored as (in, out) for the x @ W convention, at logical shapes.
    """
    ks = jax.random.split(key, 6)
    lim1_w = 1.0 / np.sqrt(H2)          # fan_in_init(fc2) -> 1/sqrt(300) (last call wins)
    lim1_b = 1.0 / np.sqrt(STATE_SIZE)  # default bias init for fc1
    lim2 = 1.0 / np.sqrt(H1)            # default init for fc2 (weight & bias)
    lim3_w = 0.003                      # fc3 weight override
    lim3_b = 1.0 / np.sqrt(H2)          # default bias init for fc3

    w1 = jax.random.uniform(ks[0], (STATE_SIZE, H1), jnp.float32, -lim1_w, lim1_w)
    b1 = jax.random.uniform(ks[1], (1, H1), jnp.float32, -lim1_b, lim1_b)
    w2 = jax.random.uniform(ks[2], (H1, H2), jnp.float32, -lim2, lim2)
    b2 = jax.random.uniform(ks[3], (1, H2), jnp.float32, -lim2, lim2)
    w3 = jax.random.uniform(ks[4], (H2, ACTION_SIZE), jnp.float32, -lim3_w, lim3_w)
    b3 = jax.random.uniform(ks[5], (1, ACTION_SIZE), jnp.float32, -lim3_b, lim3_b)
    return (w1, b1, w2, b2, w3, b3)


def pack_params(params):
    """Cast weights to bf16 (dense contraction dims, only H2 padded 300->304)
    and pack the three f32 biases into a single (3, BCAT_W) array.

    Zero weight columns + zero bias entries keep the padded units exactly inert
    (ReLU(0)=0, and zero rows contribute nothing to the next matmul).
    """
    w1, b1, w2, b2, w3, b3 = params
    bf = jnp.bfloat16
    w1p = w1.astype(bf)                                                      # (24, 400)
    w2p = jnp.zeros((H1, H2_PAD), bf).at[:, :H2].set(w2.astype(bf))          # (400, 304)
    w3p = jnp.zeros((H2_PAD, OUT_PAD), bf).at[:H2, :ACTION_SIZE].set(w3.astype(bf))  # (304, 128)
    bcat = jnp.zeros((3, BCAT_W), jnp.float32)
    bcat = bcat.at[0, :H1].set(b1[0])
    bcat = bcat.at[1, :H2].set(b2[0])
    bcat = bcat.at[2, :ACTION_SIZE].set(b3[0])
    return (w1p, w2p, w3p, bcat)


def reference_forward(x, params):
    """Pure-JAX reference mirroring the kernel's bf16-input / f32-accumulate math."""
    w1, b1, w2, b2, w3, b3 = params
    bf = jnp.bfloat16
    h1 = jnp.maximum(
        jnp.dot(x.astype(bf), w1.astype(bf), preferred_element_type=jnp.float32) + b1, 0.0)
    h2 = jnp.maximum(
        jnp.dot(h1.astype(bf), w2.astype(bf), preferred_element_type=jnp.float32) + b2, 0.0)
    return jnp.tanh(
        jnp.dot(h2.astype(bf), w3.astype(bf), preferred_element_type=jnp.float32) + b3)


if __name__ == "__main__":
    key = jax.random.PRNGKey(0)
    k_params, k_x1, k_x2 = jax.random.split(key, 3)

    params = init_params(k_params)
    packed = pack_params(params)

    # Small rollout-style batch (single grid step).
    batch = 2
    x = jax.random.normal(k_x1, (batch, STATE_SIZE), jnp.float32)
    out = jax.block_until_ready(policy_actor_forward(x, packed))
    ref = reference_forward(x, params)
    np.testing.assert_allclose(np.asarray(out), np.asarray(ref), rtol=2e-3, atol=2e-3)
    assert out.shape == (batch, ACTION_SIZE)
    assert bool(jnp.all(jnp.abs(out) <= 1.0))

    # Larger batch to exercise the multi-tile (grid >= 2) + batch-padding path.
    big_batch = 300
    xb = jax.random.normal(k_x2, (big_batch, STATE_SIZE), jnp.float32)
    outb = jax.block_until_ready(policy_actor_forward(xb, packed))
    refb = reference_forward(xb, params)
    np.testing.assert_allclose(np.asarray(outb), np.asarray(refb), rtol=2e-3, atol=2e-3)
    assert outb.shape == (big_batch, ACTION_SIZE)

    print("KERNEL_OK")
</pallas_src>

<mosaic_0001>
module attributes {stable_mosaic.version = 11 : i64} {
  func.func @actor_kernel(%arg0: i32, %arg1: memref<8x24xf32, #tpu.memory_space<vmem>>, %arg2: memref<24x400xbf16, #tpu.memory_space<vmem>>, %arg3: memref<400x304xbf16, #tpu.memory_space<vmem>>, %arg4: memref<304x128xbf16, #tpu.memory_space<vmem>>, %arg5: memref<3x400xf32, #tpu.memory_space<vmem>>, %arg6: memref<8x128xf32, #tpu.memory_space<vmem>>) attributes {dimension_semantics = [#tpu.dimension_semantics<parallel>], iteration_bounds = array<i64: 1>, scalar_prefetch = 0 : i64, scratch_operands = 0 : i64, tpu.core_type = #tpu.core_type<tc>, window_params = [{transform_indices = @transform_0, window_bounds = array<i64: 8, 24>}, {pipeline_mode = #tpu.pipeline_mode<synchronous>, transform_indices = @transform_1, window_bounds = array<i64: 24, 400>}, {pipeline_mode = #tpu.pipeline_mode<synchronous>, transform_indices = @transform_2, window_bounds = array<i64: 400, 304>}, {pipeline_mode = #tpu.pipeline_mode<synchronous>, transform_indices = @transform_3, window_bounds = array<i64: 304, 128>}, {pipeline_mode = #tpu.pipeline_mode<synchronous>, transform_indices = @transform_4, window_bounds = array<i64: 3, 400>}, {transform_indices = @transform_5, window_bounds = array<i64: 8, 128>}]} {
    %c0 = arith.constant 0 : index
    %c0_0 = arith.constant 0 : index
    %0 = vector.load %arg5[%c0, %c0_0] : memref<3x400xf32, #tpu.memory_space<vmem>>, vector<1x400xf32>
    %c1 = arith.constant 1 : index
    %c0_1 = arith.constant 0 : index
    %1 = vector.load %arg5[%c1, %c0_1] : memref<3x400xf32, #tpu.memory_space<vmem>>, vector<1x304xf32>
    %c2 = arith.constant 2 : index
    %c0_2 = arith.constant 0 : index
    %2 = vector.load %arg5[%c2, %c0_2] : memref<3x400xf32, #tpu.memory_space<vmem>>, vector<1x128xf32>
    %c0_3 = arith.constant 0 : index
    %c0_4 = arith.constant 0 : index
    %3 = vector.load %arg1[%c0_3, %c0_4] : memref<8x24xf32, #tpu.memory_space<vmem>>, vector<8x24xf32>
    %4 = arith.truncf %3 : vector<8x24xf32> to vector<8x24xbf16>
    %c0_5 = arith.constant 0 : index
    %c0_6 = arith.constant 0 : index
    %5 = vector.load %arg2[%c0_5, %c0_6] : memref<24x400xbf16, #tpu.memory_space<vmem>>, vector<24x400xbf16>
    %cst = arith.constant dense<0.000000e+00> : vector<8x400xf32>
    %6 = tpu.matmul %4, %5, %cst {dimension_numbers = #tpu.dot_dimension_numbers<[1], [0], [0], [1], [0, 0, 1, 1], [], []>} : vector<8x24xbf16>, vector<24x400xbf16>, vector<8x400xf32> -> vector<8x400xf32>
    %7 = vector.broadcast %0 : vector<1x400xf32> to vector<8x400xf32>
    %8 = arith.addf %6, %7 : vector<8x400xf32>
    %cst_7 = arith.constant 0.000000e+00 : f32
    %9 = vector.broadcast %cst_7 : f32 to vector<8x400xf32>
    %10 = arith.maximumf %8, %9 : vector<8x400xf32>
    %11 = arith.truncf %10 : vector<8x400xf32> to vector<8x400xbf16>
    %c0_8 = arith.constant 0 : index
    %c0_9 = arith.constant 0 : index
    %12 = vector.load %arg3[%c0_8, %c0_9] : memref<400x304xbf16, #tpu.memory_space<vmem>>, vector<400x304xbf16>
    %cst_10 = arith.constant dense<0.000000e+00> : vector<8x304xf32>
    %13 = tpu.matmul %11, %12, %cst_10 {dimension_numbers = #tpu.dot_dimension_numbers<[1], [0], [0], [1], [0, 0, 1, 1], [], []>} : vector<8x400xbf16>, vector<400x304xbf16>, vector<8x304xf32> -> vector<8x304xf32>
    %14 = vector.broadcast %1 : vector<1x304xf32> to vector<8x304xf32>
    %15 = arith.addf %13, %14 : vector<8x304xf32>
    %cst_11 = arith.constant 0.000000e+00 : f32
    %16 = vector.broadcast %cst_11 : f32 to vector<8x304xf32>
    %17 = arith.maximumf %15, %16 : vector<8x304xf32>
    %18 = arith.truncf %17 : vector<8x304xf32> to vector<8x304xbf16>
    %c0_12 = arith.constant 0 : index
    %c0_13 = arith.constant 0 : index
    %19 = vector.load %arg4[%c0_12, %c0_13] : memref<304x128xbf16, #tpu.memory_space<vmem>>, vector<304x128xbf16>
    %cst_14 = arith.constant dense<0.000000e+00> : vector<8x128xf32>
    %20 = tpu.matmul %18, %19, %cst_14 {dimension_numbers = #tpu.dot_dimension_numbers<[1], [0], [0], [1], [0, 0, 1, 1], [], []>} : vector<8x304xbf16>, vector<304x128xbf16>, vector<8x128xf32> -> vector<8x128xf32>
    %21 = vector.broadcast %2 : vector<1x128xf32> to vector<8x128xf32>
    %22 = arith.addf %20, %21 : vector<8x128xf32>
    %23 = math.tanh %22 : vector<8x128xf32>
    %c0_15 = arith.constant 0 : index
    %c0_16 = arith.constant 0 : index
    %24 = vector.load %arg6[%c0_15, %c0_16] : memref<8x128xf32, #tpu.memory_space<vmem>>, vector<8x128xf32>
    tpu.vector_store %arg6[%c0_15, %c0_16], %23 {strides = array<i32>} : memref<8x128xf32, #tpu.memory_space<vmem>>, vector<8x128xf32>,
    return
  }
  func.func @transform_0(%arg0: i32) -> (i32, i32) {
    %c0_i32 = arith.constant 0 : i32
    %c0_i32_0 = arith.constant 0 : i32
    return %arg0, %c0_i32 : i32, i32
  }
  func.func @transform_1(%arg0: i32) -> (i32, i32) {
    %c0_i32 = arith.constant 0 : i32
    %c0_i32_0 = arith.constant 0 : i32
    %c0_i32_1 = arith.constant 0 : i32
    return %c0_i32, %c0_i32_0 : i32, i32
  }
  func.func @transform_2(%arg0: i32) -> (i32, i32) {
    %c0_i32 = arith.constant 0 : i32
    %c0_i32_0 = arith.constant 0 : i32
    %c0_i32_1 = arith.constant 0 : i32
    return %c0_i32, %c0_i32_0 : i32, i32
  }
  func.func @transform_3(%arg0: i32) -> (i32, i32) {
    %c0_i32 = arith.constant 0 : i32
    %c0_i32_0 = arith.constant 0 : i32
    %c0_i32_1 = arith.constant 0 : i32
    return %c0_i32, %c0_i32_0 : i32, i32
  }
  func.func @transform_4(%arg0: i32) -> (i32, i32) {
    %c0_i32 = arith.constant 0 : i32
    %c0_i32_0 = arith.constant 0 : i32
    %c0_i32_1 = arith.constant 0 : i32
    return %c0_i32, %c0_i32_0 : i32, i32
  }
  func.func @transform_5(%arg0: i32) -> (i32, i32) {
    %c0_i32 = arith.constant 0 : i32
    %c0_i32_0 = arith.constant 0 : i32
    return %arg0, %c0_i32 : i32, i32
  }
}

</mosaic_0001>

<llo_original>
// kernel: tpu_custom_call.1
$region0: #{tpu_custom_call.1}
  #allocation0 [shape = 'u32[]', space=smem, size = 0x4, offset = 0x4, fixed_abs, tag = 'smem constant byte address 0x4 - core index']
  #allocation1 [shape = 'u32[144,128]{1,0:T(1,128)}', space=vmem, size = 0x12000, scoped, tag = 'internal scratch']
  %s0 = inlined_call_operand.hbm [shape: f32[8,24], index: 0, kind: input, shape index: {}]
  %s1 = inlined_call_operand.hbm [shape: bf16[24,400], index: 1, kind: input, shape index: {}]
  %s2 = inlined_call_operand.hbm [shape: bf16[400,304], index: 2, kind: input, shape index: {}]
  %s3 = inlined_call_operand.hbm [shape: bf16[304,128], index: 3, kind: input, shape index: {}]
  %s4 = inlined_call_operand.hbm [shape: f32[3,400], index: 4, kind: input, shape index: {}]
  %s5 = inlined_call_operand.hbm [shape: f32[8,128], index: 5, kind: output, shape index: {}]
  %s6 = sld [smem:[#allocation0]]
  $region50: #{tpu_custom_call.1} parent=0
    _
  %s8 = ssub.s32 1, %s6
  %s9 = scalar_select 0, %s8, %s6
  $region1: #{tpu_custom_call.1} parent=0
    #allocation2 [shape = 'u8[4096]{0}', space=vmem, size = 0x1000, scoped, tag = 'input window, operand 0, single buffered']
    #allocation3 [shape = 's32[1]{0}', space=sflag, size = 0x4, scoped, tag = 'scoped memory for tpu_custom_call.1']
    #allocation4 [shape = 's32[1]{0}', space=sflag, size = 0x4, scoped, tag = 'scoped memory for tpu_custom_call.1']
    #allocation5 [shape = 'u8[24576]{0}', space=vmem, size = 0x6000, scoped, tag = 'input window, operand 1, single buffered']
    #allocation6 [shape = 's32[1]{0}', space=sflag, size = 0x4, scoped, tag = 'scoped memory for tpu_custom_call.1']
    #allocation7 [shape = 'u8[307200]{0}', space=vmem, size = 0x4b000, scoped, tag = 'input window, operand 2, single buffered']
    #allocation8 [shape = 'u8[77824]{0}', space=vmem, size = 0x13000, scoped, tag = 'input window, operand 3, single buffered']
    #allocation9 [shape = 's32[1]{0}', space=sflag, size = 0x4, scoped, tag = 'scoped memory for tpu_custom_call.1']
    #allocation10 [shape = 'u8[8192]{0}', space=vmem, size = 0x2000, scoped, tag = 'input window, operand 4, single buffered']
    #allocation11 [shape = 'u8[4096]{0}', space=vmem, size = 0x1000, scoped, tag = 'output window, operand 0, single buffered']
    %10 = vsyncpa [#allocation3], 0
    %11 = vsyncpa [#allocation6], 0
    %12 = vsyncpa [#allocation9], 0
    %13 = vsyncpa [#allocation4], 0
    // Predicated region
    $region2: #{tpu_custom_call.1} parent=1 // pred_check
      _
    $region3: #{tpu_custom_call.1} parent=1 // pred_check_branch
      %15 = sbr.rel (0) target = $region5
    $region4: #{tpu_custom_call.1} parent=1 // pred_region
      %s17 = ssub.s32 128, 128
      %18 = vsyncadd [#allocation3], %s17
      %s20 = sshll.u32 [#allocation2], 4
      %s21 = int_to_ptr.vmem [resolvable:$true] %s20
      %23 = dma.hbm_to_vmem [thread:$0]  %s0, 128, %s21, [#allocation3]
    $region5: #{tpu_custom_call.1} parent=1 // pred_fallthru
      _
    // Predicated region
    $region6: #{tpu_custom_call.1} parent=1 // pred_check
      _
    $region7: #{tpu_custom_call.1} parent=1 // pred_check_branch
      %25 = sbr.rel (0) target = $region9
    $region8: #{tpu_custom_call.1} parent=1 // pred_region
      %s27 = ssub.s32 768, 768
      %28 = vsyncadd [#allocation6], %s27
      %s29 = sshll.u32 [#allocation5], 4
      %s30 = int_to_ptr.vmem [resolvable:$true] %s29
      %35 = dma.hbm_to_vmem [thread:$0]  %s1, 768, %s30, [#allocation6], 256, 256, 16
    $region9: #{tpu_custom_call.1} parent=1 // pred_fallthru
      _
    // Predicated region
    $region10: #{tpu_custom_call.1} parent=1 // pred_check
      _
    $region11: #{tpu_custom_call.1} parent=1 // pred_check_branch
      %37 = sbr.rel (0) target = $region13
    $region12: #{tpu_custom_call.1} parent=1 // pred_region
      %s39 = ssub.s32 9600, 9600
      %40 = vsyncadd [#allocation6], %s39
      %s41 = sshll.u32 [#allocation7], 4
      %s42 = int_to_ptr.vmem [resolvable:$true] %s41
      %47 = dma.hbm_to_vmem [thread:$0]  %s2, 9600, %s42, [#allocation6], 192, 192, 12
    $region13: #{tpu_custom_call.1} parent=1 // pred_fallthru
      _
    // Predicated region
    $region14: #{tpu_custom_call.1} parent=1 // pred_check
      _
    $region15: #{tpu_custom_call.1} parent=1 // pred_check_branch
      %49 = sbr.rel (0) target = $region17
    $region16: #{tpu_custom_call.1} parent=1 // pred_region
      %s51 = ssub.s32 2432, 2432
      %52 = vsyncadd [#allocation9], %s51
      %s53 = sshll.u32 [#allocation8], 4
      %s54 = int_to_ptr.vmem [resolvable:$true] %s53
      %59 = dma.hbm_to_vmem [thread:$0]  %s3, 2432, %s54, [#allocation9], 64, 64, 4
    $region17: #{tpu_custom_call.1} parent=1 // pred_fallthru
      _
    // Predicated region
    $region18: #{tpu_custom_call.1} parent=1 // pred_check
      _
    $region19: #{tpu_custom_call.1} parent=1 // pred_check_branch
      %61 = sbr.rel (0) target = $region21
    $region20: #{tpu_custom_call.1} parent=1 // pred_region
      %s63 = ssub.s32 256, 256
      %64 = vsyncadd [#allocation9], %s63
      %s66 = sshll.u32 [#allocation10], 4
      %s67 = int_to_ptr.vmem [resolvable:$true] %s66
      %69 = dma.hbm_to_vmem [thread:$0]  %s4, 256, %s67, [#allocation9]
    $region21: #{tpu_custom_call.1} parent=1 // pred_fallthru
      _
    // Predicated region
    $region22: #{tpu_custom_call.1} parent=1 // pred_check
      _
    $region23: #{tpu_custom_call.1} parent=1 // pred_check_branch
      %71 = sbr.rel (0) target = $region25
    $region24: #{tpu_custom_call.1} parent=1 // pred_region
      %72 = dma.done [#allocation3], 128
    $region25: #{tpu_custom_call.1} parent=1 // pred_fallthru
      _
    // Predicated region
    $region26: #{tpu_custom_call.1} parent=1 // pred_check
      _
    $region27: #{tpu_custom_call.1} parent=1 // pred_check_branch
      %74 = sbr.rel (0) target = $region29
    $region28: #{tpu_custom_call.1} parent=1 // pred_region
      %75 = dma.done [#allocation6], 768
    $region29: #{tpu_custom_call.1} parent=1 // pred_fallthru
      _
    // Predicated region
    $region30: #{tpu_custom_call.1} parent=1 // pred_check
      _
    $region31: #{tpu_custom_call.1} parent=1 // pred_check_branch
      %77 = sbr.rel (0) target = $region33
    $region32: #{tpu_custom_call.1} parent=1 // pred_region
      %78 = dma.done [#allocation6], 9600
    $region33: #{tpu_custom_call.1} parent=1 // pred_fallthru
      _
    // Predicated region
    $region34: #{tpu_custom_call.1} parent=1 // pred_check
      _
    $region35: #{tpu_custom_call.1} parent=1 // pred_check_branch
      %80 = sbr.rel (0) target = $region37
    $region36: #{tpu_custom_call.1} parent=1 // pred_region
      %81 = dma.done [#allocation9], 2432
    $region37: #{tpu_custom_call.1} parent=1 // pred_fallthru
      _
    // Predicated region
    $region38: #{tpu_custom_call.1} parent=1 // pred_check
      _
    $region39: #{tpu_custom_call.1} parent=1 // pred_check_branch
      %83 = sbr.rel (0) target = $region41
    $region40: #{tpu_custom_call.1} parent=1 // pred_region
      %84 = dma.done [#allocation9], 256
    $region41: #{tpu_custom_call.1} parent=1 // pred_fallthru
      _
    %v86 = vld [vmem:[#allocation10] ss:$4 sm:$0xf]
    %s87 = scalar_lea.vmem [#allocation10], 1
    %v88 = vld [vmem:[%s87] ss:$4 sm:$0x7]
    %v89 = vld [vmem:[#allocation10 + $0x2] sm:$0x1]
    %v90 = vld [vmem:[#allocation2] sm:$0xff]
    %v91 = vpack.c.bf16 %v90, %v90
    %v92 = vld [vmem:[#allocation5] sm:$0xff]
    %v93 = vld [vmem:[#allocation5 + $0x8] sm:$0xff]
    %v94 = vld [vmem:[#allocation5 + $0x10] sm:$0xff]
    %v95 = vld [vmem:[#allocation5 + $0x18] sm:$0xff]
    %v96 = vld [vmem:[#allocation5 + $0x20] sm:$0xff]
    %v97 = vld [vmem:[#allocation5 + $0x28] sm:$0xff]
    %v99 = vlaneseq
    %v100 = vshrl.u32 %v99, 7
    %v101 = vsub.s32 0, %v100
    %v102 = vrot.slane %v86, %v101
    %v103 = vlaneseq
    %v104 = vshrl.u32 %v103, 7
    %v105 = vsub.s32 1, %v104
    %v106 = vrot.slane %v86, %v105
    %v107 = vlaneseq
    %v108 = vshrl.u32 %v107, 7
    %v109 = vsub.s32 2, %v108
    %v110 = vrot.slane %v86, %v109
    %v111 = vlaneseq
    %v112 = vshrl.u32 %v111, 7
    %v113 = vsub.s32 3, %v112
    %v114 = vrot.slane %v86, %v113
    %v125 = vunpack.c.l.b16 %v92
    %v126 = vunpack.c.h.b16 %v92
    %v127 = vunpack.c.l.b16 %v93
    %v128 = vunpack.c.h.b16 %v93
    %v129 = vunpack.c.l.b16 %v94
    %v130 = vunpack.c.h.b16 %v94
    %v131 = vunpack.c.l.b16 %v95
    %v132 = vunpack.c.h.b16 %v95
    %v133 = vunpack.c.l.b16 %v96
    %v134 = vunpack.c.h.b16 %v96
    %v135 = vunpack.c.l.b16 %v97
    %v136 = vunpack.c.h.b16 %v97
    %v137 = vpack.c.b16 %v129, %v125
    %v138 = vpack.c.b16 %v130, %v126
    %v139 = vpack.c.b16 %v131, %v127
    %v140 = vpack.c.b16 %v132, %v128
    %v141 = vpack.c.b16 %v133, %v133
    %v142 = vpack.c.b16 %v134, %v134
    %v143 = vpack.c.b16 %v135, %v135
    %v144 = vpack.c.b16 %v136, %v136
    %vm149 = vcmask 195584
    %v151 = vsel %vm149, %v91, 0
    %vm153 = vcmask 1043456
    %v155 = vsel %vm153, %v141, 0
    %v158 = vsel %vm153, %v142, 0
    %v161 = vsel %vm153, %v143, 0
    %v164 = vsel %vm153, %v144, 0
    %166 = vmatprep.subr.bf16.mxu0 0
    %167 = vmatpush1.bf16.msra.mxu0 0
    %168 = vmatprep.subr.bf16.mxu0 0
    %169 = vmatpush1.bf16.msra.mxu0 0
    %170 = vmatprep.subr.bf16.mxu0 0
    %171 = vmatpush1.bf16.msra.mxu0 0
    %172 = vmatprep.subr.bf16.mxu0 0
    %173 = vmatpush1.bf16.msra.mxu0 0
    %174 = vmatprep.subr.bf16.mxu0 0
    %175 = vmatpush1.bf16.msra.mxu0 0
    %176 = vmatprep.subr.bf16.mxu0 0
    %177 = vmatpush1.bf16.msra.mxu0 0
    %178 = vmatprep.subr.bf16.mxu0 %v158
    %179 = vmatpush1.bf16.msra.mxu0 %v155
    %180 = vmatprep.subr.bf16.mxu0 %v138
    %181 = vmatpush1.bf16.msra.mxu0 %v137
    %182 = vmatprep.subr.bf16.mxu0 0
    %183 = vmatpush2.bf16.msra.mxu0 0
    %184 = vmatprep.subr.bf16.mxu0 0
    %185 = vmatpush2.bf16.msra.mxu0 0
    %186 = vmatprep.subr.bf16.mxu0 0
    %187 = vmatpush2.bf16.msra.mxu0 0
    %188 = vmatprep.subr.bf16.mxu0 0
    %189 = vmatpush2.bf16.msra.mxu0 0
    %190 = vmatprep.subr.bf16.mxu0 0
    %191 = vmatpush2.bf16.msra.mxu0 0
    %192 = vmatprep.subr.bf16.mxu0 0
    %193 = vmatpush2.bf16.msra.mxu0 0
    %194 = vmatprep.subr.bf16.mxu0 0
    %195 = vmatpush2.bf16.msra.mxu0 0
    %196 = vmatprep.subr.bf16.mxu0 0
    %197 = vmatpush2.bf16.msra.mxu0 0
    %198 = vmatprep.mubr.bf16.mxu0 0
    %199 = vmatmul.mubr.bf16.gmra.mxu0 %v151
    %v200 = vpop.f32.mrf.mxu0
    %v201 = vadd.f32 %v102, %v200
    %v202 = vpop.f32.mrf.mxu0
    %v203 = vadd.f32 %v106, %v202
    %v204 = vpop.f32.mrf.mxu0
    %v205 = vpop.f32.mrf.mxu0
    %206 = vdwg.mxu0
    %207 = vmatprep.subr.bf16.mxu0 0
    %208 = vmatpush1.bf16.msra.mxu0 0
    %209 = vmatprep.subr.bf16.mxu0 0
    %210 = vmatpush1.bf16.msra.mxu0 0
    %211 = vmatprep.subr.bf16.mxu0 0
    %212 = vmatpush1.bf16.msra.mxu0 0
    %213 = vmatprep.subr.bf16.mxu0 0
    %214 = vmatpush1.bf16.msra.mxu0 0
    %215 = vmatprep.subr.bf16.mxu0 0
    %216 = vmatpush1.bf16.msra.mxu0 0
    %217 = vmatprep.subr.bf16.mxu0 0
    %218 = vmatpush1.bf16.msra.mxu0 0
    %219 = vmatprep.subr.bf16.mxu0 %v164
    %220 = vmatpush1.bf16.msra.mxu0 %v161
    %221 = vmatprep.subr.bf16.mxu0 %v140
    %222 = vmatpush1.bf16.msra.mxu0 %v139
    %223 = vmatprep.subr.bf16.mxu0 0
    %224 = vmatpush2.bf16.msra.mxu0 0
    %225 = vmatprep.subr.bf16.mxu0 0
    %226 = vmatpush2.bf16.msra.mxu0 0
    %227 = vmatprep.subr.bf16.mxu0 0
    %228 = vmatpush2.bf16.msra.mxu0 0
    %229 = vmatprep.subr.bf16.mxu0 0
    %230 = vmatpush2.bf16.msra.mxu0 0
    %231 = vmatprep.subr.bf16.mxu0 0
    %232 = vmatpush2.bf16.msra.mxu0 0
    %233 = vmatprep.subr.bf16.mxu0 0
    %234 = vmatpush2.bf16.msra.mxu0 0
    %235 = vmatprep.subr.bf16.mxu0 0
    %236 = vmatpush2.bf16.msra.mxu0 0
    %237 = vmatprep.subr.bf16.mxu0 0
    %238 = vmatpush2.bf16.msra.mxu0 0
    %239 = vmatprep.mubr.bf16.mxu0 0
    %240 = vmatmul.mubr.bf16.gmra.mxu0 %v151
    %v241 = vpop.f32.mrf.mxu0
    %v242 = vadd.f32 %v110, %v241
    %v243 = vpop.f32.mrf.mxu0
    %v244 = vadd.f32 %v114, %v243
    %v245 = vpop.f32.mrf.mxu0
    %v246 = vpop.f32.mrf.mxu0
    %247 = vdwg.mxu0
    %v248 = vmax.f32 %v201, 0.0
    %v249 = vmax.f32 %v203, 0.0
    %v250 = vmax.f32 %v242, 0.0
    %v251 = vmax.f32 %v244, 0.0
    %v252 = vpack.c.bf16 %v248, %v248
    %v253 = vpack.c.bf16 %v249, %v249
    %v254 = vpack.c.bf16 %v250, %v250
    %v255 = vpack.c.bf16 %v251, %v251
    %v256 = vld [vmem:[#allocation7] sm:$0xff]
    %v257 = vld [vmem:[#allocation7 + $0x8] sm:$0xf]
    %v258 = vld [vmem:[#allocation7 + $0xc] sm:$0xff]
    %v259 = vld [vmem:[#allocation7 + $0x14] sm:$0xf]
    %v260 = vld [vmem:[#allocation7 + $0x18] sm:$0xff]
    %v261 = vld [vmem:[#allocation7 + $0x20] sm:$0xf]
    %v262 = vld [vmem:[#allocation7 + $0x24] sm:$0xff]
    %v263 = vld [vmem:[#allocation7 + $0x2c] sm:$0xf]
    %v264 = vld [vmem:[#allocation7 + $0x30] sm:$0xff]
    %v265 = vld [vmem:[#allocation7 + $0x38] sm:$0xf]
    %v266 = vld [vmem:[#allocation7 + $0x3c] sm:$0xff]
    %v267 = vld [vmem:[#allocation7 + $0x44] sm:$0xf]
    %v268 = vld [vmem:[#allocation7 + $0x48] sm:$0xff]
    %v269 = vld [vmem:[#allocation7 + $0x50] sm:$0xf]
    %v270 = vld [vmem:[#allocation7 + $0x54] sm:$0xff]
    %v271 = vld [vmem:[#allocation7 + $0x5c] sm:$0xf]
    %v272 = vld [vmem:[#allocation7 + $0x60] sm:$0xff]
    %v273 = vld [vmem:[#allocation7 + $0x68] sm:$0xf]
    %v274 = vld [vmem:[#allocation7 + $0x6c] sm:$0xff]
    %v275 = vld [vmem:[#allocation7 + $0x74] sm:$0xf]
    %v276 = vld [vmem:[#allocation7 + $0x78] sm:$0xff]
    %v277 = vld [vmem:[#allocation7 + $0x80] sm:$0xf]
    %v278 = vld [vmem:[#allocation7 + $0x84] sm:$0xff]
    %v279 = vld [vmem:[#allocation7 + $0x8c] sm:$0xf]
    %v280 = vld [vmem:[#allocation7 + $0x90] sm:$0xff]
    %v281 = vld [vmem:[#allocation7 + $0x98] sm:$0xf]
    %v282 = vld [vmem:[#allocation7 + $0x9c] sm:$0xff]
    %v283 = vld [vmem:[#allocation7 + $0xa4] sm:$0xf]
    %v284 = vld [vmem:[#allocation7 + $0xa8] sm:$0xff]
    %v285 = vld [vmem:[#allocation7 + $0xb0] sm:$0xf]
    %v286 = vld [vmem:[#allocation7 + $0xb4] sm:$0xff]
    %v287 = vld [vmem:[#allocation7 + $0xbc] sm:$0xf]
    %v288 = vld [vmem:[#allocation7 + $0xc0] sm:$0xff]
    %v289 = vld [vmem:[#allocation7 + $0xc8] sm:$0xf]
    %v290 = vld [vmem:[#allocation7 + $0xcc] sm:$0xff]
    %v291 = vld [vmem:[#allocation7 + $0xd4] sm:$0xf]
    %v292 = vld [vmem:[#allocation7 + $0xd8] sm:$0xff]
    %v293 = vld [vmem:[#allocation7 + $0xe0] sm:$0xf]
    %v294 = vld [vmem:[#allocation7 + $0xe4] sm:$0xff]
    %v295 = vld [vmem:[#allocation7 + $0xec] sm:$0xf]
    %v296 = vld [vmem:[#allocation7 + $0xf0] sm:$0xff]
    %v297 = vld [vmem:[#allocation7 + $0xf8] sm:$0xf]
    %v298 = vld [vmem:[#allocation7 + $0xfc] sm:$0xff]
    %v299 = vld [vmem:[#allocation7 + $0x104] sm:$0xf]
    %v300 = vld [vmem:[#allocation7 + $0x108] sm:$0xff]
    %v301 = vld [vmem:[#allocation7 + $0x110] sm:$0xf]
    %v302 = vld [vmem:[#allocation7 + $0x114] sm:$0xff]
    %v303 = vld [vmem:[#allocation7 + $0x11c] sm:$0xf]
    %v304 = vld [vmem:[#allocation7 + $0x120] sm:$0xff]
    %v305 = vld [vmem:[#allocation7 + $0x128] sm:$0xf]
    %v306 = vld [vmem:[#allocation7 + $0x12c] sm:$0xff]
    %v307 = vld [vmem:[#allocation7 + $0x134] sm:$0xf]
    %v308 = vld [vmem:[#allocation7 + $0x138] sm:$0xff]
    %v309 = vld [vmem:[#allocation7 + $0x140] sm:$0xf]
    %v310 = vld [vmem:[#allocation7 + $0x144] sm:$0xff]
    %v311 = vld [vmem:[#allocation7 + $0x14c] sm:$0xf]
    %v312 = vld [vmem:[#allocation7 + $0x150] sm:$0xff]
    %v313 = vld [vmem:[#allocation7 + $0x158] sm:$0xf]
    %v314 = vld [vmem:[#allocation7 + $0x15c] sm:$0xff]
    %v315 = vld [vmem:[#allocation7 + $0x164] sm:$0xf]
    %v316 = vld [vmem:[#allocation7 + $0x168] sm:$0xff]
    %v317 = vld [vmem:[#allocation7 + $0x170] sm:$0xf]
    %v318 = vld [vmem:[#allocation7 + $0x174] sm:$0xff]
    %v319 = vld [vmem:[#allocation7 + $0x17c] sm:$0xf]
    %v320 = vld [vmem:[#allocation7 + $0x180] sm:$0xff]
    %v321 = vld [vmem:[#allocation7 + $0x188] sm:$0xf]
    %v322 = vld [vmem:[#allocation7 + $0x18c] sm:$0xff]
    %v323 = vld [vmem:[#allocation7 + $0x194] sm:$0xf]
    %v324 = vld [vmem:[#allocation7 + $0x198] sm:$0xff]
    %v325 = vld [vmem:[#allocation7 + $0x1a0] sm:$0xf]
    %v326 = vld [vmem:[#allocation7 + $0x1a4] sm:$0xff]
    %v327 = vld [vmem:[#allocation7 + $0x1ac] sm:$0xf]
    %v328 = vld [vmem:[#allocation7 + $0x1b0] sm:$0xff]
    %v329 = vld [vmem:[#allocation7 + $0x1b8] sm:$0xf]
    %v330 = vld [vmem:[#allocation7 + $0x1bc] sm:$0xff]
    %v331 = vld [vmem:[#allocation7 + $0x1c4] sm:$0xf]
    %v332 = vld [vmem:[#allocation7 + $0x1c8] sm:$0xff]
    %v333 = vld [vmem:[#allocation7 + $0x1d0] sm:$0xf]
    %v334 = vld [vmem:[#allocation7 + $0x1d4] sm:$0xff]
    %v335 = vld [vmem:[#allocation7 + $0x1dc] sm:$0xf]
    %v336 = vld [vmem:[#allocation7 + $0x1e0] sm:$0xff]
    %v337 = vld [vmem:[#allocation7 + $0x1e8] sm:$0xf]
    %v338 = vld [vmem:[#allocation7 + $0x1ec] sm:$0xff]
    %v339 = vld [vmem:[#allocation7 + $0x1f4] sm:$0xf]
    %v340 = vld [vmem:[#allocation7 + $0x1f8] sm:$0xff]
    %v341 = vld [vmem:[#allocation7 + $0x200] sm:$0xf]
    %v342 = vld [vmem:[#allocation7 + $0x204] sm:$0xff]
    %v343 = vld [vmem:[#allocation7 + $0x20c] sm:$0xf]
    %v344 = vld [vmem:[#allocation7 + $0x210] sm:$0xff]
    %v345 = vld [vmem:[#allocation7 + $0x218] sm:$0xf]
    %v346 = vld [vmem:[#allocation7 + $0x21c] sm:$0xff]
    %v347 = vld [vmem:[#allocation7 + $0x224] sm:$0xf]
    %v348 = vld [vmem:[#allocation7 + $0x228] sm:$0xff]
    %v349 = vld [vmem:[#allocation7 + $0x230] sm:$0xf]
    %v350 = vld [vmem:[#allocation7 + $0x234] sm:$0xff]
    %v351 = vld [vmem:[#allocation7 + $0x23c] sm:$0xf]
    %v352 = vld [vmem:[#allocation7 + $0x240] sm:$0xff]
    %v353 = vld [vmem:[#allocation7 + $0x248] sm:$0xf]
    %v354 = vld [vmem:[#allocation7 + $0x24c] sm:$0xff]
    %v355 = vld [vmem:[#allocation7 + $0x254] sm:$0xf]
    %v357 = vlaneseq
    %v358 = vshrl.u32 %v357, 7
    %v359 = vsub.s32 0, %v358
    %v360 = vrot.slane %v88, %v359
    %v361 = vlaneseq
    %v362 = vshrl.u32 %v361, 7
    %v363 = vsub.s32 1, %v362
    %v364 = vrot.slane %v88, %v363
    %v365 = vlaneseq
    %v366 = vshrl.u32 %v365, 7
    %v367 = vsub.s32 2, %v366
    %v368 = vrot.slane %v88, %v367
    %v472 = vunpack.c.l.b16 %v256
    %v473 = vunpack.c.h.b16 %v256
    %v474 = vunpack.c.l.b16 %v257
    %v475 = vunpack.c.l.b16 %v258
    %v476 = vunpack.c.h.b16 %v258
    %v477 = vunpack.c.l.b16 %v259
    %v478 = vunpack.c.l.b16 %v260
    %v479 = vunpack.c.h.b16 %v260
    %v480 = vunpack.c.l.b16 %v261
    %v481 = vunpack.c.l.b16 %v262
    %v482 = vunpack.c.h.b16 %v262
    %v483 = vunpack.c.l.b16 %v263
    %v484 = vunpack.c.l.b16 %v264
    %v485 = vunpack.c.h.b16 %v264
    %v486 = vunpack.c.l.b16 %v265
    %v487 = vunpack.c.l.b16 %v266
    %v488 = vunpack.c.h.b16 %v266
    %v489 = vunpack.c.l.b16 %v267
    %v490 = vunpack.c.l.b16 %v268
    %v491 = vunpack.c.h.b16 %v268
    %v492 = vunpack.c.l.b16 %v269
    %v493 = vunpack.c.l.b16 %v270
    %v494 = vunpack.c.h.b16 %v270
    %v495 = vunpack.c.l.b16 %v271
    %v496 = vunpack.c.l.b16 %v272
    %v497 = vunpack.c.h.b16 %v272
    %v498 = vunpack.c.l.b16 %v273
    %v499 = vunpack.c.l.b16 %v274
    %v500 = vunpack.c.h.b16 %v274
    %v501 = vunpack.c.l.b16 %v275
    %v502 = vunpack.c.l.b16 %v276
    %v503 = vunpack.c.h.b16 %v276
    %v504 = vunpack.c.l.b16 %v277
    %v505 = vunpack.c.l.b16 %v278
    %v506 = vunpack.c.h.b16 %v278
    %v507 = vunpack.c.l.b16 %v279
    %v508 = vunpack.c.l.b16 %v280
    %v509 = vunpack.c.h.b16 %v280
    %v510 = vunpack.c.l.b16 %v281
    %v511 = vunpack.c.l.b16 %v282
    %v512 = vunpack.c.h.b16 %v282
    %v513 = vunpack.c.l.b16 %v283
    %v514 = vunpack.c.l.b16 %v284
    %v515 = vunpack.c.h.b16 %v284
    %v516 = vunpack.c.l.b16 %v285
    %v517 = vunpack.c.l.b16 %v286
    %v518 = vunpack.c.h.b16 %v286
    %v519 = vunpack.c.l.b16 %v287
    %v520 = vunpack.c.l.b16 %v288
    %v521 = vunpack.c.h.b16 %v288
    %v522 = vunpack.c.l.b16 %v289
    %v523 = vunpack.c.l.b16 %v290
    %v524 = vunpack.c.h.b16 %v290
    %v525 = vunpack.c.l.b16 %v291
    %v526 = vunpack.c.l.b16 %v292
    %v527 = vunpack.c.h.b16 %v292
    %v528 = vunpack.c.l.b16 %v293
    %v529 = vunpack.c.l.b16 %v294
    %v530 = vunpack.c.h.b16 %v294
    %v531 = vunpack.c.l.b16 %v295
    %v532 = vunpack.c.l.b16 %v296
    %v533 = vunpack.c.h.b16 %v296
    %v534 = vunpack.c.l.b16 %v297
    %v535 = vunpack.c.l.b16 %v298
    %v536 = vunpack.c.h.b16 %v298
    %v537 = vunpack.c.l.b16 %v299
    %v538 = vunpack.c.l.b16 %v300
    %v539 = vunpack.c.h.b16 %v300
    %v540 = vunpack.c.l.b16 %v301
    %v541 = vunpack.c.l.b16 %v302
    %v542 = vunpack.c.h.b16 %v302
    %v543 = vunpack.c.l.b16 %v303
    %v544 = vunpack.c.l.b16 %v304
    %v545 = vunpack.c.h.b16 %v304
    %v546 = vunpack.c.l.b16 %v305
    %v547 = vunpack.c.l.b16 %v306
    %v548 = vunpack.c.h.b16 %v306
    %v549 = vunpack.c.l.b16 %v307
    %v550 = vunpack.c.l.b16 %v308
    %v551 = vunpack.c.h.b16 %v308
    %v552 = vunpack.c.l.b16 %v309
    %v553 = vunpack.c.l.b16 %v310
    %v554 = vunpack.c.h.b16 %v310
    %v555 = vunpack.c.l.b16 %v311
    %v556 = vunpack.c.l.b16 %v312
    %v557 = vunpack.c.h.b16 %v312
    %v558 = vunpack.c.l.b16 %v313
    %v559 = vunpack.c.l.b16 %v314
    %v560 = vunpack.c.h.b16 %v314
    %v561 = vunpack.c.l.b16 %v315
    %v562 = vunpack.c.l.b16 %v316
    %v563 = vunpack.c.h.b16 %v316
    %v564 = vunpack.c.l.b16 %v317
    %v565 = vunpack.c.l.b16 %v318
    %v566 = vunpack.c.h.b16 %v318
    %v567 = vunpack.c.l.b16 %v319
    %v568 = vunpack.c.l.b16 %v320
    %v569 = vunpack.c.h.b16 %v320
    %v570 = vunpack.c.l.b16 %v321
    %v571 = vunpack.c.l.b16 %v322
    %v572 = vunpack.c.h.b16 %v322
    %v573 = vunpack.c.l.b16 %v323
    %v574 = vunpack.c.l.b16 %v324
    %v575 = vunpack.c.h.b16 %v324
    %v576 = vunpack.c.l.b16 %v325
    %v577 = vunpack.c.l.b16 %v326
    %v578 = vunpack.c.h.b16 %v326
    %v579 = vunpack.c.l.b16 %v327
    %v580 = vunpack.c.l.b16 %v328
    %v581 = vunpack.c.h.b16 %v328
    %v582 = vunpack.c.l.b16 %v329
    %v583 = vunpack.c.l.b16 %v330
    %v584 = vunpack.c.h.b16 %v330
    %v585 = vunpack.c.l.b16 %v331
    %v586 = vunpack.c.l.b16 %v332
    %v587 = vunpack.c.h.b16 %v332
    %v588 = vunpack.c.l.b16 %v333
    %v589 = vunpack.c.l.b16 %v334
    %v590 = vunpack.c.h.b16 %v334
    %v591 = vunpack.c.l.b16 %v335
    %v592 = vunpack.c.l.b16 %v336
    %v593 = vunpack.c.h.b16 %v336
    %v594 = vunpack.c.l.b16 %v337
    %v595 = vunpack.c.l.b16 %v338
    %v596 = vunpack.c.h.b16 %v338
    %v597 = vunpack.c.l.b16 %v339
    %v598 = vunpack.c.l.b16 %v340
    %v599 = vunpack.c.h.b16 %v340
    %v600 = vunpack.c.l.b16 %v341
    %v601 = vunpack.c.l.b16 %v342
    %v602 = vunpack.c.h.b16 %v342
    %v603 = vunpack.c.l.b16 %v343
    %v604 = vunpack.c.l.b16 %v344
    %v605 = vunpack.c.h.b16 %v344
    %v606 = vunpack.c.l.b16 %v345
    %v607 = vunpack.c.l.b16 %v346
    %v608 = vunpack.c.h.b16 %v346
    %v609 = vunpack.c.l.b16 %v347
    %v610 = vunpack.c.l.b16 %v348
    %v611 = vunpack.c.h.b16 %v348
    %v612 = vunpack.c.l.b16 %v349
    %v613 = vunpack.c.l.b16 %v350
    %v614 = vunpack.c.h.b16 %v350
    %v615 = vunpack.c.l.b16 %v351
    %v616 = vunpack.c.l.b16 %v352
    %v617 = vunpack.c.h.b16 %v352
    %v618 = vunpack.c.l.b16 %v353
    %v619 = vunpack.c.l.b16 %v354
    %v620 = vunpack.c.h.b16 %v354
    %v621 = vunpack.c.l.b16 %v355
    %v622 = vpack.c.b16 %v475, %v472
    %v623 = vpack.c.b16 %v476, %v473
    %v624 = vpack.c.b16 %v477, %v474
    %v625 = vpack.c.b16 %v481, %v478
    %v626 = vpack.c.b16 %v482, %v479
    %v627 = vpack.c.b16 %v483, %v480
    %v628 = vpack.c.b16 %v487, %v484
    %v629 = vpack.c.b16 %v488, %v485
    %v630 = vpack.c.b16 %v489, %v486
    %v631 = vpack.c.b16 %v493, %v490
    %v632 = vpack.c.b16 %v494, %v491
    %v633 = vpack.c.b16 %v495, %v492
    %v634 = vpack.c.b16 %v499, %v496
    %v635 = vpack.c.b16 %v500, %v497
    %v636 = vpack.c.b16 %v501, %v498
    %v637 = vpack.c.b16 %v505, %v502
    %v638 = vpack.c.b16 %v506, %v503
    %v639 = vpack.c.b16 %v507, %v504
    %v640 = vpack.c.b16 %v511, %v508
    %v641 = vpack.c.b16 %v512, %v509
    %v642 = vpack.c.b16 %v513, %v510
    %v643 = vpack.c.b16 %v517, %v514
    %v644 = vpack.c.b16 %v518, %v515
    %v645 = vpack.c.b16 %v519, %v516
    %v646 = vpack.c.b16 %v523, %v520
    %v647 = vpack.c.b16 %v524, %v521
    %v648 = vpack.c.b16 %v525, %v522
    %v649 = vpack.c.b16 %v529, %v526
    %v650 = vpack.c.b16 %v530, %v527
    %v651 = vpack.c.b16 %v531, %v528
    %v652 = vpack.c.b16 %v535, %v532
    %v653 = vpack.c.b16 %v536, %v533
    %v654 = vpack.c.b16 %v537, %v534
    %v655 = vpack.c.b16 %v541, %v538
    %v656 = vpack.c.b16 %v542, %v539
    %v657 = vpack.c.b16 %v543, %v540
    %v658 = vpack.c.b16 %v547, %v544
    %v659 = vpack.c.b16 %v548, %v545
    %v660 = vpack.c.b16 %v549, %v546
    %v661 = vpack.c.b16 %v553, %v550
    %v662 = vpack.c.b16 %v554, %v551
    %v663 = vpack.c.b16 %v555, %v552
    %v664 = vpack.c.b16 %v559, %v556
    %v665 = vpack.c.b16 %v560, %v557
    %v666 = vpack.c.b16 %v561, %v558
    %v667 = vpack.c.b16 %v565, %v562
    %v668 = vpack.c.b16 %v566, %v563
    %v669 = vpack.c.b16 %v567, %v564
    %v670 = vpack.c.b16 %v571, %v568
    %v671 = vpack.c.b16 %v572, %v569
    %v672 = vpack.c.b16 %v573, %v570
    %v673 = vpack.c.b16 %v577, %v574
    %v674 = vpack.c.b16 %v578, %v575
    %v675 = vpack.c.b16 %v579, %v576
    %v676 = vpack.c.b16 %v583, %v580
    %v677 = vpack.c.b16 %v584, %v581
    %v678 = vpack.c.b16 %v585, %v582
    %v679 = vpack.c.b16 %v589, %v586
    %v680 = vpack.c.b16 %v590, %v587
    %v681 = vpack.c.b16 %v591, %v588
    %v682 = vpack.c.b16 %v595, %v592
    %v683 = vpack.c.b16 %v596, %v593
    %v684 = vpack.c.b16 %v597, %v594
    %v685 = vpack.c.b16 %v601, %v598
    %v686 = vpack.c.b16 %v602, %v599
    %v687 = vpack.c.b16 %v603, %v600
    %v688 = vpack.c.b16 %v607, %v604
    %v689 = vpack.c.b16 %v608, %v605
    %v690 = vpack.c.b16 %v609, %v606
    %v691 = vpack.c.b16 %v613, %v610
    %v692 = vpack.c.b16 %v614, %v611
    %v693 = vpack.c.b16 %v615, %v612
    %v694 = vpack.c.b16 %v619, %v616
    %v695 = vpack.c.b16 %v620, %v617
    %v696 = vpack.c.b16 %v621, %v618
    %vm772 = vcmask 130048
    %v774 = vsel %vm772, %v255, 0
    %776 = vmatprep.subr.bf16.mxu0 %v644
    %777 = vmatpush1.bf16.msra.mxu0 %v643
    %778 = vmatprep.subr.bf16.mxu0 %v641
    %779 = vmatpush1.bf16.msra.mxu0 %v640
    %780 = vmatprep.subr.bf16.mxu0 %v638
    %781 = vmatpush1.bf16.msra.mxu0 %v637
    %782 = vmatprep.subr.bf16.mxu0 %v635
    %783 = vmatpush1.bf16.msra.mxu0 %v634
    %784 = vmatprep.subr.bf16.mxu0 %v632
    %785 = vmatpush1.bf16.msra.mxu0 %v631
    %786 = vmatprep.subr.bf16.mxu0 %v629
    %787 = vmatpush1.bf16.msra.mxu0 %v628
    %788 = vmatprep.subr.bf16.mxu0 %v626
    %789 = vmatpush1.bf16.msra.mxu0 %v625
    %790 = vmatprep.subr.bf16.mxu0 %v623
    %791 = vmatpush1.bf16.msra.mxu0 %v622
    %792 = vmatprep.subr.bf16.mxu0 %v668
    %793 = vmatpush2.bf16.msra.mxu0 %v667
    %794 = vmatprep.subr.bf16.mxu0 %v665
    %795 = vmatpush2.bf16.msra.mxu0 %v664
    %796 = vmatprep.subr.bf16.mxu0 %v662
    %797 = vmatpush2.bf16.msra.mxu0 %v661
    %798 = vmatprep.subr.bf16.mxu0 %v659
    %799 = vmatpush2.bf16.msra.mxu0 %v658
    %800 = vmatprep.subr.bf16.mxu0 %v656
    %801 = vmatpush2.bf16.msra.mxu0 %v655
    %802 = vmatprep.subr.bf16.mxu0 %v653
    %803 = vmatpush2.bf16.msra.mxu0 %v652
    %804 = vmatprep.subr.bf16.mxu0 %v650
    %805 = vmatpush2.bf16.msra.mxu0 %v649
    %806 = vmatprep.subr.bf16.mxu0 %v647
    %807 = vmatpush2.bf16.msra.mxu0 %v646
    %808 = vmatprep.mubr.bf16.mxu0 %v253
    %809 = vmatmul.mubr.bf16.gmra.mxu0 %v252
    %v810 = vpop.f32.mrf.mxu0
    %v811 = vadd.f32 %v360, %v810
    %v812 = vpop.f32.mrf.mxu0
    %v813 = vadd.f32 %v364, %v812
    %v814 = vpop.f32.mrf.mxu0
    %v815 = vpop.f32.mrf.mxu0
    %816 = vdwg.mxu0
    %817 = vmatprep.subr.bf16.mxu0 %v692
    %818 = vmatpush1.bf16.msra.mxu0 %v691
    %819 = vmatprep.subr.bf16.mxu0 %v689
    %820 = vmatpush1.bf16.msra.mxu0 %v688
    %821 = vmatprep.subr.bf16.mxu0 %v686
    %822 = vmatpush1.bf16.msra.mxu0 %v685
    %823 = vmatprep.subr.bf16.mxu0 %v683
    %824 = vmatpush1.bf16.msra.mxu0 %v682
    %825 = vmatprep.subr.bf16.mxu0 %v680
    %826 = vmatpush1.bf16.msra.mxu0 %v679
    %827 = vmatprep.subr.bf16.mxu0 %v677
    %828 = vmatpush1.bf16.msra.mxu0 %v676
    %829 = vmatprep.subr.bf16.mxu0 %v674
    %830 = vmatpush1.bf16.msra.mxu0 %v673
    %831 = vmatprep.subr.bf16.mxu0 %v671
    %832 = vmatpush1.bf16.msra.mxu0 %v670
    %833 = vmatprep.subr.bf16.mxu0 0
    %834 = vmatpush2.bf16.msra.mxu0 0
    %835 = vmatprep.subr.bf16.mxu0 0
    %836 = vmatpush2.bf16.msra.mxu0 0
    %837 = vmatprep.subr.bf16.mxu0 0
    %838 = vmatpush2.bf16.msra.mxu0 0
    %839 = vmatprep.subr.bf16.mxu0 0
    %840 = vmatpush2.bf16.msra.mxu0 0
    %841 = vmatprep.subr.bf16.mxu0 0
    %842 = vmatpush2.bf16.msra.mxu0 0
    %843 = vmatprep.subr.bf16.mxu0 0
    %844 = vmatpush2.bf16.msra.mxu0 0
    %845 = vmatprep.subr.bf16.mxu0 0
    %846 = vmatpush2.bf16.msra.mxu0 0
    %847 = vmatprep.subr.bf16.mxu0 %v695
    %848 = vmatpush2.bf16.msra.mxu0 %v694
    %849 = vmatprep.mubr.bf16.mxu0 %v774
    %850 = vmatmul.mubr.bf16.gmra.mxu0 %v254
    %v851 = vpop.f32.mrf.mxu0
    %v852 = vadd.f32 %v811, %v851
    %v853 = vpop.f32.mrf.mxu0
    %v854 = vadd.f32 %v813, %v853
    %v855 = vpop.f32.mrf.mxu0
    %v856 = vpop.f32.mrf.mxu0
    %857 = vdwg.mxu0
    %858 = vmatprep.subr.bf16.mxu0 0
    %859 = vmatpush1.bf16.msra.mxu0 %v645
    %860 = vmatprep.subr.bf16.mxu0 0
    %861 = vmatpush1.bf16.msra.mxu0 %v642
    %862 = vmatprep.subr.bf16.mxu0 0
    %863 = vmatpush1.bf16.msra.mxu0 %v639
    %864 = vmatprep.subr.bf16.mxu0 0
    %865 = vmatpush1.bf16.msra.mxu0 %v636
    %866 = vmatprep.subr.bf16.mxu0 0
    %867 = vmatpush1.bf16.msra.mxu0 %v633
    %868 = vmatprep.subr.bf16.mxu0 0
    %869 = vmatpush1.bf16.msra.mxu0 %v630
    %870 = vmatprep.subr.bf16.mxu0 0
    %871 = vmatpush1.bf16.msra.mxu0 %v627
    %872 = vmatprep.subr.bf16.mxu0 0
    %873 = vmatpush1.bf16.msra.mxu0 %v624
    %874 = vmatprep.subr.bf16.mxu0 0
    %875 = vmatpush2.bf16.msra.mxu0 %v669
    %876 = vmatprep.subr.bf16.mxu0 0
    %877 = vmatpush2.bf16.msra.mxu0 %v666
    %878 = vmatprep.subr.bf16.mxu0 0
    %879 = vmatpush2.bf16.msra.mxu0 %v663
    %880 = vmatprep.subr.bf16.mxu0 0
    %881 = vmatpush2.bf16.msra.mxu0 %v660
    %882 = vmatprep.subr.bf16.mxu0 0
    %883 = vmatpush2.bf16.msra.mxu0 %v657
    %884 = vmatprep.subr.bf16.mxu0 0
    %885 = vmatpush2.bf16.msra.mxu0 %v654
    %886 = vmatprep.subr.bf16.mxu0 0
    %887 = vmatpush2.bf16.msra.mxu0 %v651
    %888 = vmatprep.subr.bf16.mxu0 0
    %889 = vmatpush2.bf16.msra.mxu0 %v648
    %890 = vmatprep.mubr.bf16.mxu0 %v253
    %891 = vmatmul.mubr.bf16.gmra.mxu0 %v252
    %v892 = vpop.f32.mrf.mxu0
    %v893 = vadd.f32 %v368, %v892
    %v894 = vpop.f32.mrf.mxu0
    %v895 = vpop.f32.mrf.mxu0
    %v896 = vpop.f32.mrf.mxu0
    %897 = vdwg.mxu0
    %898 = vmatprep.subr.bf16.mxu0 0
    %899 = vmatpush1.bf16.msra.mxu0 %v693
    %900 = vmatprep.subr.bf16.mxu0 0
    %901 = vmatpush1.bf16.msra.mxu0 %v690
    %902 = vmatprep.subr.bf16.mxu0 0
    %903 = vmatpush1.bf16.msra.mxu0 %v687
    %904 = vmatprep.subr.bf16.mxu0 0
    %905 = vmatpush1.bf16.msra.mxu0 %v684
    %906 = vmatprep.subr.bf16.mxu0 0
    %907 = vmatpush1.bf16.msra.mxu0 %v681
    %908 = vmatprep.subr.bf16.mxu0 0
    %909 = vmatpush1.bf16.msra.mxu0 %v678
    %910 = vmatprep.subr.bf16.mxu0 0
    %911 = vmatpush1.bf16.msra.mxu0 %v675
    %912 = vmatprep.subr.bf16.mxu0 0
    %913 = vmatpush1.bf16.msra.mxu0 %v672
    %914 = vmatprep.subr.bf16.mxu0 0
    %915 = vmatpush2.bf16.msra.mxu0 0
    %916 = vmatprep.subr.bf16.mxu0 0
    %917 = vmatpush2.bf16.msra.mxu0 0
    %918 = vmatprep.subr.bf16.mxu0 0
    %919 = vmatpush2.bf16.msra.mxu0 0
    %920 = vmatprep.subr.bf16.mxu0 0
    %921 = vmatpush2.bf16.msra.mxu0 0
    %922 = vmatprep.subr.bf16.mxu0 0
    %923 = vmatpush2.bf16.msra.mxu0 0
    %924 = vmatprep.subr.bf16.mxu0 0
    %925 = vmatpush2.bf16.msra.mxu0 0
    %926 = vmatprep.subr.bf16.mxu0 0
    %927 = vmatpush2.bf16.msra.mxu0 0
    %928 = vmatprep.subr.bf16.mxu0 0
    %929 = vmatpush2.bf16.msra.mxu0 %v696
    %930 = vmatprep.mubr.bf16.mxu0 %v774
    %931 = vmatmul.mubr.bf16.gmra.mxu0 %v254
    %v932 = vpop.f32.mrf.mxu0
    %v933 = vadd.f32 %v893, %v932
    %v934 = vpop.f32.mrf.mxu0
    %v935 = vpop.f32.mrf.mxu0
    %v936 = vpop.f32.mrf.mxu0
    %937 = vdwg.mxu0
    %v938 = vmax.f32 %v852, 0.0
    %v939 = vmax.f32 %v854, 0.0
    %v940 = vmax.f32 %v933, 0.0
    %v941 = vpack.c.bf16 %v938, %v938
    %v942 = vpack.c.bf16 %v939, %v939
    %v943 = vpack.c.bf16 %v940, %v940
    %v944 = vld [vmem:[#allocation8] sm:$0xf]
    %v945 = vld [vmem:[#allocation8 + $0x4] sm:$0xf]
    %v946 = vld [vmem:[#allocation8 + $0x8] sm:$0xf]
    %v947 = vld [vmem:[#allocation8 + $0xc] sm:$0xf]
    %v948 = vld [vmem:[#allocation8 + $0x10] sm:$0xf]
    %v949 = vld [vmem:[#allocation8 + $0x14] sm:$0xf]
    %v950 = vld [vmem:[#allocation8 + $0x18] sm:$0xf]
    %v951 = vld [vmem:[#allocation8 + $0x1c] sm:$0xf]
    %v952 = vld [vmem:[#allocation8 + $0x20] sm:$0xf]
    %v953 = vld [vmem:[#allocation8 + $0x24] sm:$0xf]
    %v954 = vld [vmem:[#allocation8 + $0x28] sm:$0xf]
    %v955 = vld [vmem:[#allocation8 + $0x2c] sm:$0xf]
    %v956 = vld [vmem:[#allocation8 + $0x30] sm:$0xf]
    %v957 = vld [vmem:[#allocation8 + $0x34] sm:$0xf]
    %v958 = vld [vmem:[#allocation8 + $0x38] sm:$0xf]
    %v959 = vld [vmem:[#allocation8 + $0x3c] sm:$0xf]
    %v960 = vld [vmem:[#allocation8 + $0x40] sm:$0xf]
    %v961 = vld [vmem:[#allocation8 + $0x44] sm:$0xf]
    %v962 = vld [vmem:[#allocation8 + $0x48] sm:$0xf]
    %v963 = vld [vmem:[#allocation8 + $0x4c] sm:$0xf]
    %v964 = vld [vmem:[#allocation8 + $0x50] sm:$0xf]
    %v965 = vld [vmem:[#allocation8 + $0x54] sm:$0xf]
    %v966 = vld [vmem:[#allocation8 + $0x58] sm:$0xf]
    %v967 = vld [vmem:[#allocation8 + $0x5c] sm:$0xf]
    %v968 = vld [vmem:[#allocation8 + $0x60] sm:$0xf]
    %v969 = vld [vmem:[#allocation8 + $0x64] sm:$0xf]
    %v970 = vld [vmem:[#allocation8 + $0x68] sm:$0xf]
    %v971 = vld [vmem:[#allocation8 + $0x6c] sm:$0xf]
    %v972 = vld [vmem:[#allocation8 + $0x70] sm:$0xf]
    %v973 = vld [vmem:[#allocation8 + $0x74] sm:$0xf]
    %v974 = vld [vmem:[#allocation8 + $0x78] sm:$0xf]
    %v975 = vld [vmem:[#allocation8 + $0x7c] sm:$0xf]
    %v976 = vld [vmem:[#allocation8 + $0x80] sm:$0xf]
    %v977 = vld [vmem:[#allocation8 + $0x84] sm:$0xf]
    %v978 = vld [vmem:[#allocation8 + $0x88] sm:$0xf]
    %v979 = vld [vmem:[#allocation8 + $0x8c] sm:$0xf]
    %v980 = vld [vmem:[#allocation8 + $0x90] sm:$0xf]
    %v981 = vld [vmem:[#allocation8 + $0x94] sm:$0xf]
    %v982 = vlaneseq
    %v983 = vshrl.u32 %v982, 7
    %v984 = vsub.s32 0, %v983
    %v985 = vrot.slane %v89, %v984
    %v1024 = vunpack.c.l.b16 %v944
    %v1025 = vunpack.c.l.b16 %v945
    %v1026 = vunpack.c.l.b16 %v946
    %v1027 = vunpack.c.l.b16 %v947
    %v1028 = vunpack.c.l.b16 %v948
    %v1029 = vunpack.c.l.b16 %v949
    %v1030 = vunpack.c.l.b16 %v950
    %v1031 = vunpack.c.l.b16 %v951
    %v1032 = vunpack.c.l.b16 %v952
    %v1033 = vunpack.c.l.b16 %v953
    %v1034 = vunpack.c.l.b16 %v954
    %v1035 = vunpack.c.l.b16 %v955
    %v1036 = vunpack.c.l.b16 %v956
    %v1037 = vunpack.c.l.b16 %v957
    %v1038 = vunpack.c.l.b16 %v958
    %v1039 = vunpack.c.l.b16 %v959
    %v1040 = vunpack.c.l.b16 %v960
    %v1041 = vunpack.c.l.b16 %v961
    %v1042 = vunpack.c.l.b16 %v962
    %v1043 = vunpack.c.l.b16 %v963
    %v1044 = vunpack.c.l.b16 %v964
    %v1045 = vunpack.c.l.b16 %v965
    %v1046 = vunpack.c.l.b16 %v966
    %v1047 = vunpack.c.l.b16 %v967
    %v1048 = vunpack.c.l.b16 %v968
    %v1049 = vunpack.c.l.b16 %v969
    %v1050 = vunpack.c.l.b16 %v970
    %v1051 = vunpack.c.l.b16 %v971
    %v1052 = vunpack.c.l.b16 %v972
    %v1053 = vunpack.c.l.b16 %v973
    %v1054 = vunpack.c.l.b16 %v974
    %v1055 = vunpack.c.l.b16 %v975
    %v1056 = vunpack.c.l.b16 %v976
    %v1057 = vunpack.c.l.b16 %v977
    %v1058 = vunpack.c.l.b16 %v978
    %v1059 = vunpack.c.l.b16 %v979
    %v1060 = vunpack.c.l.b16 %v980
    %v1061 = vunpack.c.l.b16 %v981
    %v1062 = vpack.c.b16 %v1025, %v1024
    %v1063 = vpack.c.b16 %v1027, %v1026
    %v1064 = vpack.c.b16 %v1029, %v1028
    %v1065 = vpack.c.b16 %v1031, %v1030
    %v1066 = vpack.c.b16 %v1033, %v1032
    %v1067 = vpack.c.b16 %v1035, %v1034
    %v1068 = vpack.c.b16 %v1037, %v1036
    %v1069 = vpack.c.b16 %v1039, %v1038
    %v1070 = vpack.c.b16 %v1041, %v1040
    %v1071 = vpack.c.b16 %v1043, %v1042
    %v1072 = vpack.c.b16 %v1045, %v1044
    %v1073 = vpack.c.b16 %v1047, %v1046
    %v1074 = vpack.c.b16 %v1049, %v1048
    %v1075 = vpack.c.b16 %v1051, %v1050
    %v1076 = vpack.c.b16 %v1053, %v1052
    %v1077 = vpack.c.b16 %v1055, %v1054
    %v1078 = vpack.c.b16 %v1057, %v1056
    %v1079 = vpack.c.b16 %v1059, %v1058
    %v1080 = vpack.c.b16 %v1061, %v1060
    %vm1100 = vcmask 392192
    %v1102 = vsel %vm1100, %v943, 0
    %1104 = vmatprep.subr.bf16.mxu0 0
    %1105 = vmatpush1.bf16.msra.mxu0 %v1069
    %1106 = vmatprep.subr.bf16.mxu0 0
    %1107 = vmatpush1.bf16.msra.mxu0 %v1068
    %1108 = vmatprep.subr.bf16.mxu0 0
    %1109 = vmatpush1.bf16.msra.mxu0 %v1067
    %1110 = vmatprep.subr.bf16.mxu0 0
    %1111 = vmatpush1.bf16.msra.mxu0 %v1066
    %1112 = vmatprep.subr.bf16.mxu0 0
    %1113 = vmatpush1.bf16.msra.mxu0 %v1065
    %1114 = vmatprep.subr.bf16.mxu0 0
    %1115 = vmatpush1.bf16.msra.mxu0 %v1064
    %1116 = vmatprep.subr.bf16.mxu0 0
    %1117 = vmatpush1.bf16.msra.mxu0 %v1063
    %1118 = vmatprep.subr.bf16.mxu0 0
    %1119 = vmatpush1.bf16.msra.mxu0 %v1062
    %1120 = vmatprep.subr.bf16.mxu0 0
    %1121 = vmatpush2.bf16.msra.mxu0 %v1077
    %1122 = vmatprep.subr.bf16.mxu0 0
    %1123 = vmatpush2.bf16.msra.mxu0 %v1076
    %1124 = vmatprep.subr.bf16.mxu0 0
    %1125 = vmatpush2.bf16.msra.mxu0 %v1075
    %1126 = vmatprep.subr.bf16.mxu0 0
    %1127 = vmatpush2.bf16.msra.mxu0 %v1074
    %1128 = vmatprep.subr.bf16.mxu0 0
    %1129 = vmatpush2.bf16.msra.mxu0 %v1073
    %1130 = vmatprep.subr.bf16.mxu0 0
    %1131 = vmatpush2.bf16.msra.mxu0 %v1072
    %1132 = vmatprep.subr.bf16.mxu0 0
    %1133 = vmatpush2.bf16.msra.mxu0 %v1071
    %1134 = vmatprep.subr.bf16.mxu0 0
    %1135 = vmatpush2.bf16.msra.mxu0 %v1070
    %1136 = vmatprep.mubr.bf16.mxu0 %v942
    %1137 = vmatmul.mubr.bf16.gmra.mxu0 %v941
    %v1138 = vpop.f32.mrf.mxu0
    %v1139 = vadd.f32 %v985, %v1138
    %v1140 = vpop.f32.mrf.mxu0
    %v1141 = vpop.f32.mrf.mxu0
    %v1142 = vpop.f32.mrf.mxu0
    %1143 = vdwg.mxu0
    %1144 = vmatprep.subr.bf16.mxu0 0
    %1145 = vmatpush1.bf16.msra.mxu0 0
    %1146 = vmatprep.subr.bf16.mxu0 0
    %1147 = vmatpush1.bf16.msra.mxu0 0
    %1148 = vmatprep.subr.bf16.mxu0 0
    %1149 = vmatpush1.bf16.msra.mxu0 0
    %1150 = vmatprep.subr.bf16.mxu0 0
    %1151 = vmatpush1.bf16.msra.mxu0 0
    %1152 = vmatprep.subr.bf16.mxu0 0
    %1153 = vmatpush1.bf16.msra.mxu0 0
    %1154 = vmatprep.subr.bf16.mxu0 0
    %1155 = vmatpush1.bf16.msra.mxu0 %v1080
    %1156 = vmatprep.subr.bf16.mxu0 0
    %1157 = vmatpush1.bf16.msra.mxu0 %v1079
    %1158 = vmatprep.subr.bf16.mxu0 0
    %1159 = vmatpush1.bf16.msra.mxu0 %v1078
    %1160 = vmatprep.subr.bf16.mxu0 0
    %1161 = vmatpush2.bf16.msra.mxu0 0
    %1162 = vmatprep.subr.bf16.mxu0 0
    %1163 = vmatpush2.bf16.msra.mxu0 0
    %1164 = vmatprep.subr.bf16.mxu0 0
    %1165 = vmatpush2.bf16.msra.mxu0 0
    %1166 = vmatprep.subr.bf16.mxu0 0
    %1167 = vmatpush2.bf16.msra.mxu0 0
    %1168 = vmatprep.subr.bf16.mxu0 0
    %1169 = vmatpush2.bf16.msra.mxu0 0
    %1170 = vmatprep.subr.bf16.mxu0 0
    %1171 = vmatpush2.bf16.msra.mxu0 0
    %1172 = vmatprep.subr.bf16.mxu0 0
    %1173 = vmatpush2.bf16.msra.mxu0 0
    %1174 = vmatprep.subr.bf16.mxu0 0
    %1175 = vmatpush2.bf16.msra.mxu0 0
    %1176 = vmatprep.mubr.bf16.mxu0 0
    %1177 = vmatmul.mubr.bf16.gmra.mxu0 %v1102
    %v1178 = vpop.f32.mrf.mxu0
    %v1179 = vadd.f32 %v1139, %v1178
    %v1180 = vpop.f32.mrf.mxu0
    %v1181 = vpop.f32.mrf.mxu0
    %v1182 = vpop.f32.mrf.mxu0
    %1183 = vdwg.mxu0
    %v1184 = vtanh.pop %v1179
    %1185 = vst [vmem:[#allocation11] sm:$0xff] %v1184
    // Predicated region
    $region42: #{tpu_custom_call.1} parent=1 // pred_check
      _
    $region43: #{tpu_custom_call.1} parent=1 // pred_check_branch
      %1187 = sbr.rel (0) target = $region45
    $region44: #{tpu_custom_call.1} parent=1 // pred_region
      %s1189 = ssub.s32 128, 128
      %1190 = vsyncadd [#allocation4], %s1189
      %s1192 = sshll.u32 [#allocation11], 4
      %s1193 = int_to_ptr.vmem [resolvable:$true] %s1192
      %1195 = dma.vmem_to_hbm [thread:$0]  %s1193, 128, %s5, [#allocation4]
    $region45: #{tpu_custom_call.1} parent=1 // pred_fallthru
      _
    // Predicated region
    $region46: #{tpu_custom_call.1} parent=1 // pred_check
      _
    $region47: #{tpu_custom_call.1} parent=1 // pred_check_branch
      %1197 = sbr.rel (0) target = $region49
    $region48: #{tpu_custom_call.1} parent=1 // pred_region
      %1198 = dma.done [#allocation4], 128
    $region49: #{tpu_custom_call.1} parent=1 // pred_fallthru
      _
    %1199 = vsyncpa [#allocation3], 1
    %1200 = vsyncpa [#allocation6], 1
    %1201 = vsyncpa [#allocation9], 1
    %1202 = vsyncpa [#allocation4], 1

</llo_original>
